<compile_context>
chip_gen: v7x
topology: tpu7x:2x2x1
jax: 0.10.0
libtpu: 0.0.40
codegen_flags: <defaults>
</compile_context>

<pallas_src>
import jax
import jax.numpy as jnp
from jax.experimental import pallas as pl
from jax.experimental.pallas import tpu as pltpu

B = 2    # batch
S = 8    # encoder sequence length
D = 32   # input_dim (decoder-state / encoder-state dim)
A = 32   # hidden_size (attention dim)


# ----------------------------- Pallas kernels -----------------------------
def _attention_kernel(query_ref, proj_key_ref, query_wt_ref, energy_w_ref, alphas_ref):
    """Fused Attention.forward for one batch element:
         alphas = softmax(energy(tanh(query_layer(query) + proj_key)))"""
    q = jnp.dot(query_ref[0], query_wt_ref[...],
                preferred_element_type=jnp.float32)               # (1, A)
    t = jnp.tanh(q + proj_key_ref[0])                             # (S, A), broadcast over S
    # energy_layer (A -> 1, no bias), emitted lane-dense: contract A of energy_w
    # with A of t so the scores come out as (1, S) along the lanes.
    scores = jax.lax.dot_general(
        energy_w_ref[...], t,
        dimension_numbers=(((1,), (1,)), ((), ())),
        preferred_element_type=jnp.float32)                       # (1, S)
    m = jnp.max(scores, axis=-1, keepdims=True)
    e = jnp.exp(scores - m)
    alphas_ref[0] = e / jnp.sum(e, axis=-1, keepdims=True)        # (1, S)


def _project_key_kernel(enc_ref, key_wt_ref, out_ref):
    # key_layer: proj_key = encoder_states @ key_W^T   (S, D) @ (D, A) -> (S, A)
    out_ref[0] = jnp.dot(enc_ref[0], key_wt_ref[...],
                         preferred_element_type=jnp.float32)


# ----------------------------- wrappers -----------------------------
@jax.jit
def attention_forward(params, query, proj_key):
    """Equivalent of Attention.forward(query, proj_key) -> alphas (B, 1, S)."""
    b, _, d = query.shape
    s, a = proj_key.shape[1], proj_key.shape[2]
    return pl.pallas_call(
        _attention_kernel,
        out_shape=jax.ShapeDtypeStruct((b, 1, s), jnp.float32),
        grid=(b,),
        in_specs=[
            pl.BlockSpec((1, 1, d), lambda i: (i, 0, 0)),   # per-batch query block
            pl.BlockSpec((1, s, a), lambda i: (i, 0, 0)),   # per-batch proj_key block
            pl.BlockSpec((d, a), lambda i: (0, 0)),         # weights: VMEM-resident
            pl.BlockSpec((1, a), lambda i: (0, 0)),
        ],
        out_specs=pl.BlockSpec((1, 1, s), lambda i: (i, 0, 0)),
        compiler_params=pltpu.CompilerParams(dimension_semantics=("parallel",)),
    )(query, proj_key, params["query_wt"], params["energy_w"])


@jax.jit
def project_key(params, encoder_states):
    """Equivalent of attention.key_layer(encoder_states); computed once per encode."""
    b, s, d = encoder_states.shape
    a = params["key_wt"].shape[1]
    return pl.pallas_call(
        _project_key_kernel,
        out_shape=jax.ShapeDtypeStruct((b, s, a), jnp.float32),
        grid=(b,),
        in_specs=[
            pl.BlockSpec((1, s, d), lambda i: (i, 0, 0)),
            pl.BlockSpec((d, a), lambda i: (0, 0)),
        ],
        out_specs=pl.BlockSpec((1, s, a), lambda i: (i, 0, 0)),
        compiler_params=pltpu.CompilerParams(dimension_semantics=("parallel",)),
    )(encoder_states, params["key_wt"])


# ----------------------------- pure-JAX reference -----------------------------
def _attention_reference(params, query, encoder_states):
    proj_key = jnp.einsum("bsd,da->bsa", encoder_states, params["key_wt"])
    q = jnp.einsum("bqd,da->bqa", query, params["query_wt"])       # (B, 1, A)
    t = jnp.tanh(q + proj_key)                                     # (B, S, A)
    scores = jnp.einsum("bsa,a->bs", t, params["energy_w"][0])     # (B, S)
    scores = scores[:, None, :]                                    # squeeze(2).unsqueeze(1)
    return jax.nn.softmax(scores, axis=-1)                         # (B, 1, S)


# ----------------------------- driver -----------------------------
if __name__ == "__main__":
    key = jax.random.PRNGKey(0)
    k0, k1, k2, k3, k4 = jax.random.split(key, 5)

    scale = 1.0 / jnp.sqrt(jnp.float32(D))
    # Linear weights stored transposed (in_dim, out_dim) so kernels do x @ W^T directly.
    params = {
        "key_wt":   jax.random.uniform(k0, (D, A), jnp.float32, -scale, scale),
        "query_wt": jax.random.uniform(k1, (D, A), jnp.float32, -scale, scale),
        "energy_w": jax.random.uniform(k2, (1, A), jnp.float32, -scale, scale),
    }

    encoder_states = jax.random.normal(k3, (B, S, D), jnp.float32)
    query = jax.random.normal(k4, (B, 1, D), jnp.float32)

    proj_key = project_key(params, encoder_states)          # key_layer (once per encode)
    alphas = attention_forward(params, query, proj_key)     # Attention.forward (fused kernel)
    jax.block_until_ready((proj_key, alphas))

    # correctness checks
    assert alphas.shape == (B, 1, S)
    assert bool(jnp.all(jnp.abs(jnp.sum(alphas, axis=-1) - 1.0) < 1e-5))
    ref = _attention_reference(params, query, encoder_states)
    assert bool(jnp.allclose(alphas, ref, atol=1e-4, rtol=1e-4))

    # TODO(synk): `self.alphas = alphas` module-attribute caching has no kernel
    #             equivalent; alphas are simply returned.
    print("KERNEL_OK")
</pallas_src>

<mosaic_0001>
module attributes {stable_mosaic.version = 11 : i64} {
  func.func @_project_key_kernel(%arg0: i32, %arg1: memref<1x8x32xf32, #tpu.memory_space<vmem>>, %arg2: memref<32x32xf32, #tpu.memory_space<vmem>>, %arg3: memref<1x8x32xf32, #tpu.memory_space<vmem>>) attributes {dimension_semantics = [#tpu.dimension_semantics<parallel>], iteration_bounds = array<i64: 2>, scalar_prefetch = 0 : i64, scratch_operands = 0 : i64, tpu.core_type = #tpu.core_type<tc>, window_params = [{transform_indices = @transform_0, window_bounds = array<i64: 1, 8, 32>}, {pipeline_mode = #tpu.pipeline_mode<synchronous>, transform_indices = @transform_1, window_bounds = array<i64: 32, 32>}, {transform_indices = @transform_2, window_bounds = array<i64: 1, 8, 32>}]} {
    %c0 = arith.constant 0 : index
    %c0_0 = arith.constant 0 : index
    %c0_1 = arith.constant 0 : index
    %0 = vector.load %arg1[%c0, %c0_0, %c0_1] : memref<1x8x32xf32, #tpu.memory_space<vmem>>, vector<1x8x32xf32>
    %1 = vector.shape_cast %0 : vector<1x8x32xf32> to vector<8x32xf32>
    %c0_2 = arith.constant 0 : index
    %c0_3 = arith.constant 0 : index
    %2 = vector.load %arg2[%c0_2, %c0_3] : memref<32x32xf32, #tpu.memory_space<vmem>>, vector<32x32xf32>
    %cst = arith.constant dense<0.000000e+00> : vector<8x32xf32>
    %3 = tpu.matmul %1, %2, %cst {dimension_numbers = #tpu.dot_dimension_numbers<[1], [0], [0], [1], [0, 0, 1, 1], [], []>} : vector<8x32xf32>, vector<32x32xf32>, vector<8x32xf32> -> vector<8x32xf32>
    %c0_4 = arith.constant 0 : index
    %c0_5 = arith.constant 0 : index
    %c0_6 = arith.constant 0 : index
    %4 = vector.load %arg3[%c0_4, %c0_5, %c0_6] : memref<1x8x32xf32, #tpu.memory_space<vmem>>, vector<1x8x32xf32>
    %5 = vector.shape_cast %4 : vector<1x8x32xf32> to vector<8x32xf32>
    %6 = vector.shape_cast %3 : vector<8x32xf32> to vector<1x8x32xf32>
    tpu.vector_store %arg3[%c0_4, %c0_5, %c0_6], %6 {strides = array<i32>} : memref<1x8x32xf32, #tpu.memory_space<vmem>>, vector<1x8x32xf32>,
    return
  }
  func.func @transform_0(%arg0: i32) -> (i32, i32, i32) {
    %c0_i32 = arith.constant 0 : i32
    %c0_i32_0 = arith.constant 0 : i32
    %c0_i32_1 = arith.constant 0 : i32
    return %arg0, %c0_i32, %c0_i32_0 : i32, i32, i32
  }
  func.func @transform_1(%arg0: i32) -> (i32, i32) {
    %c0_i32 = arith.constant 0 : i32
    %c0_i32_0 = arith.constant 0 : i32
    %c0_i32_1 = arith.constant 0 : i32
    return %c0_i32, %c0_i32_0 : i32, i32
  }
  func.func @transform_2(%arg0: i32) -> (i32, i32, i32) {
    %c0_i32 = arith.constant 0 : i32
    %c0_i32_0 = arith.constant 0 : i32
    %c0_i32_1 = arith.constant 0 : i32
    return %arg0, %c0_i32, %c0_i32_0 : i32, i32, i32
  }
}

</mosaic_0001>

<llo_original>
// kernel: project_key.1
$region0: #{project_key.1}
  #allocation0 [shape = 'u32[]', space=smem, size = 0x4, offset = 0x4, fixed_abs, tag = 'smem constant byte address 0x4 - core index']
  #allocation1 [shape = 'u32[144,128]{1,0:T(1,128)}', space=vmem, size = 0x12000, scoped, tag = 'internal scratch']
  %s0 = inlined_call_operand.hbm [shape: f32[2,8,32], index: 0, kind: input, shape index: {}]
  %s1 = inlined_call_operand.hbm [shape: f32[32,32], index: 1, kind: input, shape index: {}]
  %s2 = inlined_call_operand.hbm [shape: f32[2,8,32], index: 2, kind: output, shape index: {}]
  %s3 = sld [smem:[#allocation0]]
  $region49: #{project_key.1} parent=0
    _
  %s5 = ssub.s32 1, %s3
  %s6 = scalar_select 0, %s5, %s3
  $region1: #{project_key.1} parent=0
    #allocation2 [shape = 'u8[8192]{0}', space=vmem, size = 0x2000, scoped, tag = 'input window, operand 0']
    #allocation3 [shape = 's32[2]{0}', space=sflag, size = 0x8, scoped, tag = 'scoped memory for project_key.1']
    #allocation4 [shape = 's32[2]{0}', space=sflag, size = 0x8, scoped, tag = 'scoped memory for project_key.1']
    #allocation5 [shape = 'u8[16384]{0}', space=vmem, size = 0x4000, scoped, tag = 'input window, operand 1, single buffered']
    #allocation6 [shape = 's32[1]{0}', space=sflag, size = 0x4, scoped, tag = 'scoped memory for project_key.1']
    #allocation7 [shape = 'u8[8192]{0}', space=vmem, size = 0x2000, scoped, tag = 'output window, operand 0']
    %7 = vsyncpa [#allocation3], 0
    %s8 = scalar_lea.sflag [#allocation3], 1
    %9 = vsyncpa %s8, 0
    %10 = vsyncpa [#allocation6], 0
    %11 = vsyncpa [#allocation4], 0
    %s12 = scalar_lea.sflag [#allocation4], 1
    %13 = vsyncpa %s12, 0
    loop: start=0, step=1, limit=4
    $region2: #{project_key.1} parent=1 // loop_pre_header
      _
    $region3: #{project_key.1} parent=1 // loop_header
      %s15 = sphi 0, %s19
      %p16 = scmp.ge.s32.totalorder %s15, 4
      %s25 = sphi 0, %s27
      %s28 = sphi 0, %s25
      %s29 = sphi 0, %s28
      %s45 = sphi 0, %s29
      %s49 = sphi 0, %s49
      %s51 = sphi 0, %s49
      %s52 = sphi 0, %s51
      %s66 = sphi 0, %s52
      %s72 = sphi 0, %s74
      %s75 = sphi 0, %s72
      %s76 = sphi 0, %s75
      %s92 = sphi 0, %s76
    $region4: #{project_key.1} parent=1 // loop_header_branch
      %18 = sbr.rel (%p16) target = $region8
    $region5: #{project_key.1} parent=1 // loop_body
      %s20 = ssub.s32 %s15, 1
      %s21 = ssub.s32 %s15, 2
      %s22 = sadd.s32 %s15, 1
      %s23 = ssub.s32 %s15, %s22
      %p24 = scmp.eq.s32.totalorder %s23, 0
      %s26 = sadd.s32 %s25, 1
      %s27 = scalar_select %p24, %s25, %s26
      %p30 = pneg %p24
      %p31 = scmp.eq.s32.totalorder %s15, 1
      %p32 = por %p30, %p31
      %p33 = scmp.ne.s32.totalorder %s25, %s28
      %p34 = scmp.eq.s32.totalorder %s15, 0
      %p35 = por %p33, %p34
      %p36 = scmp.ne.s32.totalorder %s25, %s28
      %p37 = scmp.eq.s32.totalorder %s20, 1
      %p38 = por %p36, %p37
      %p39 = scmp.ne.s32.totalorder %s28, %s29
      %p40 = scmp.eq.s32.totalorder %s20, 0
      %p41 = por %p39, %p40
      %p42 = scmp.ne.s32.totalorder %s28, %s29
      %p43 = scmp.eq.s32.totalorder %s21, 1
      %p44 = por %p42, %p43
      %p46 = scmp.ne.s32.totalorder %s29, %s45
      %p47 = scmp.eq.s32.totalorder %s21, 0
      %p48 = por %p46, %p47
      %s50 = sadd.s32 %s49, 1
      %p53 = scmp.eq.s32.totalorder %s15, 1
      %p54 = scmp.ne.s32.totalorder %s49, %s51
      %p55 = scmp.eq.s32.totalorder %s15, 0
      %p56 = por %p54, %p55
      %p57 = scmp.ne.s32.totalorder %s49, %s51
      %p58 = scmp.eq.s32.totalorder %s20, 1
      %p59 = por %p57, %p58
      %p60 = scmp.ne.s32.totalorder %s51, %s52
      %p61 = scmp.eq.s32.totalorder %s20, 0
      %p62 = por %p60, %p61
      %p63 = scmp.ne.s32.totalorder %s51, %s52
      %p64 = scmp.eq.s32.totalorder %s21, 1
      %p65 = por %p63, %p64
      %p67 = scmp.ne.s32.totalorder %s52, %s66
      %p68 = scmp.eq.s32.totalorder %s21, 0
      %p69 = por %p67, %p68
      %s70 = ssub.s32 %s15, %s22
      %p71 = scmp.eq.s32.totalorder %s70, 0
      %s73 = sadd.s32 %s72, 1
      %s74 = scalar_select %p71, %s72, %s73
      %p77 = pneg %p71
      %p78 = scmp.eq.s32.totalorder %s15, 1
      %p79 = por %p77, %p78
      %p80 = scmp.ne.s32.totalorder %s72, %s75
      %p81 = scmp.eq.s32.totalorder %s15, 0
      %p82 = por %p80, %p81
      %p83 = scmp.ne.s32.totalorder %s72, %s75
      %p84 = scmp.eq.s32.totalorder %s20, 1
      %p85 = por %p83, %p84
      %p86 = scmp.ne.s32.totalorder %s75, %s76
      %p87 = scmp.eq.s32.totalorder %s20, 0
      %p88 = por %p86, %p87
      %p89 = scmp.ne.s32.totalorder %s75, %s76
      %p90 = scmp.eq.s32.totalorder %s21, 1
      %p91 = por %p89, %p90
      %p93 = scmp.ne.s32.totalorder %s76, %s92
      %p94 = scmp.eq.s32.totalorder %s21, 0
      %p95 = por %p93, %p94
      %p96 = scmp.le.s32.totalorder 1, %s15
      %p97 = scmp.lt.s32.totalorder %s15, 3
      %p98 = pnand %p96, %p97
      %p99 = pneg %p98
      // Predicated region
      $region9: #{project_key.1} parent=5 // pred_check
        _
      $region10: #{project_key.1} parent=5 // pred_check_branch
        %101 = sbr.rel (%p98) target = $region12
      $region11: #{project_key.1} parent=5 // pred_region
        %s102 = ssub.s32 %s15, 1
        // Predicated region
        $region13: #{project_key.1} parent=11 // pred_check
          %p103 = pneg %p62
        $region14: #{project_key.1} parent=11 // pred_check_branch
          %105 = sbr.rel (%p103) target = $region16
        $region15: #{project_key.1} parent=11 // pred_region
          %s107 = ssub.s32 512, 512
          %108 = vsyncadd [#allocation6], %s107
          %s109 = sshll.u32 [#allocation5], 4
          %s110 = int_to_ptr.vmem [resolvable:$true] %s109
          %115 = dma.hbm_to_vmem [thread:$0]  %s1, 512, %s110, [#allocation6], 128, 128, 8
        $region16: #{project_key.1} parent=11 // pred_fallthru
          _
      $region12: #{project_key.1} parent=5 // pred_fallthru
        _
      %p116 = scmp.lt.s32.totalorder %s15, 2
      // Predicated region
      $region17: #{project_key.1} parent=5 // pred_check
        %p117 = pneg %p116
      $region18: #{project_key.1} parent=5 // pred_check_branch
        %119 = sbr.rel (%p117) target = $region20
      $region19: #{project_key.1} parent=5 // pred_region
        // Predicated region
        $region21: #{project_key.1} parent=19 // pred_check
          %p120 = pneg %p35
        $region22: #{project_key.1} parent=19 // pred_check_branch
          %122 = sbr.rel (%p120) target = $region24
        $region23: #{project_key.1} parent=19 // pred_region
          %s123 = sand.u32 %s25, 1
          %s124 = scalar_lea.sflag [#allocation3], %s123
          %s125 = sand.u32 %s25, 1
          %s126 = smul.addr %s125, 8
          %s127 = scalar_lea.vmem [#allocation2], %s126
          %s129 = ssub.s32 128, 128
          %130 = vsyncadd %s124, %s129
          %s131 = smul.addr %s15, 128
          %s132 = scalar_lea.hbm %s0, %s131
          %s134 = sshll.u32 %s127, 4
          %s135 = int_to_ptr.vmem [resolvable:$true] %s134
          %137 = dma.hbm_to_vmem [thread:$0]  %s132, 128, %s135, %s124
        $region24: #{project_key.1} parent=19 // pred_fallthru
          _
      $region20: #{project_key.1} parent=5 // pred_fallthru
        _
      %p138 = scmp.le.s32.totalorder 1, %s15
      %p139 = scmp.lt.s32.totalorder %s15, 3
      %p140 = pnand %p138, %p139
      %p141 = pneg %p140
      // Predicated region
      $region25: #{project_key.1} parent=5 // pred_check
        _
      $region26: #{project_key.1} parent=5 // pred_check_branch
        %143 = sbr.rel (%p140) target = $region28
      $region27: #{project_key.1} parent=5 // pred_region
        %s144 = ssub.s32 %s15, 1
        %s145 = sand.u32 %s28, 1
        %s146 = scalar_lea.sflag [#allocation3], %s145
        %s147 = sand.u32 %s28, 1
        %s148 = smul.addr %s147, 8
        %s149 = scalar_lea.vmem [#allocation2], %s148
        // Predicated region
        $region29: #{project_key.1} parent=27 // pred_check
          %p150 = pneg %p41
        $region30: #{project_key.1} parent=27 // pred_check_branch
          %152 = sbr.rel (%p150) target = $region32
        $region31: #{project_key.1} parent=27 // pred_region
          %153 = dma.done %s146, 128
        $region32: #{project_key.1} parent=27 // pred_fallthru
          _
        // Predicated region
        $region33: #{project_key.1} parent=27 // pred_check
          %p154 = pneg %p62
        $region34: #{project_key.1} parent=27 // pred_check_branch
          %156 = sbr.rel (%p154) target = $region36
        $region35: #{project_key.1} parent=27 // pred_region
          %157 = dma.done [#allocation6], 512
        $region36: #{project_key.1} parent=27 // pred_fallthru
          _
        %s158 = sand.u32 %s28, 1
        %s159 = scalar_lea.sflag [#allocation3], %s158
        %s160 = sand.u32 %s28, 1
        %s161 = smul.addr %s160, 8
        %s162 = scalar_lea.vmem [#allocation2], %s161
        %p163 = pneg %p41
        %p164 = pneg %p38
        %p165 = pneg %p62
        %p166 = pneg %p59
        %p167 = pneg %p88
        %p168 = pneg %p85
        %s169 = sand.u32 %s75, 1
        %s170 = scalar_lea.sflag [#allocation4], %s169
        %s171 = sand.u32 %s75, 1
        %s172 = smul.addr %s171, 8
        %s173 = scalar_lea.vmem [#allocation7], %s172
        %v174 = vld [vmem:[%s149] sm:$0xff]
        %v175 = vld [vmem:[#allocation5] sm:$0xff]
        %v176 = vld [vmem:[#allocation5 + $0x8] sm:$0xff]
        %v177 = vld [vmem:[#allocation5 + $0x10] sm:$0xff]
        %v178 = vld [vmem:[#allocation5 + $0x18] sm:$0xff]
        %vm179 = vcmask 261120
        %v181 = vsel %vm179, %v174, 0
        %183 = vmatprep.subr.mxu0 0.0
        %184 = vmatpush1.msra.mxu0 %v175
        %185 = vmatprep.subr.mxu0 0.0
        %186 = vmatpush1.msra.mxu0 %v176
        %187 = vmatprep.subr.mxu0 0.0
        %188 = vmatpush1.msra.mxu0 %v177
        %189 = vmatprep.subr.mxu0 0.0
        %190 = vmatpush1.msra.mxu0 %v178
        %191 = vmatprep.subr.mxu0 0.0
        %192 = vmatpush1.msra.mxu0 0.0
        %193 = vmatprep.subr.mxu0 0.0
        %194 = vmatpush1.msra.mxu0 0.0
        %195 = vmatprep.subr.mxu0 0.0
        %196 = vmatpush1.msra.mxu0 0.0
        %197 = vmatprep.subr.mxu0 0.0
        %198 = vmatpush1.msra.mxu0 0.0
        %199 = vmatprep.subr.mxu0 0.0
        %200 = vmatpush1.msra.mxu0 0.0
        %201 = vmatprep.subr.mxu0 0.0
        %202 = vmatpush1.msra.mxu0 0.0
        %203 = vmatprep.subr.mxu0 0.0
        %204 = vmatpush1.msra.mxu0 0.0
        %205 = vmatprep.subr.mxu0 0.0
        %206 = vmatpush1.msra.mxu0 0.0
        %207 = vmatprep.subr.mxu0 0.0
        %208 = vmatpush1.msra.mxu0 0.0
        %209 = vmatprep.subr.mxu0 0.0
        %210 = vmatpush1.msra.mxu0 0.0
        %211 = vmatprep.subr.mxu0 0.0
        %212 = vmatpush1.msra.mxu0 0.0
        %213 = vmatprep.subr.mxu0 0.0
        %214 = vmatpush1.msra.mxu0 0.0
        %215 = vmatprep.subr.mxu0 0.0
        %216 = vmatpush1.msra.mxu0 0.0
        %217 = vmatprep.subr.mxu0 0.0
        %218 = vmatpush1.msra.mxu0 0.0
        %219 = vmatprep.subr.mxu0 0.0
        %220 = vmatpush1.msra.mxu0 0.0
        %221 = vmatprep.subr.mxu0 0.0
        %222 = vmatpush1.msra.mxu0 0.0
        %223 = vmatprep.subr.mxu0 0.0
        %224 = vmatpush1.msra.mxu0 0.0
        %225 = vmatprep.subr.mxu0 0.0
        %226 = vmatpush1.msra.mxu0 0.0
        %227 = vmatprep.subr.mxu0 0.0
        %228 = vmatpush1.msra.mxu0 0.0
        %229 = vmatprep.subr.mxu0 0.0
        %230 = vmatpush1.msra.mxu0 0.0
        %231 = vmatprep.subr.mxu0 0.0
        %232 = vmatpush1.msra.mxu0 0.0
        %233 = vmatprep.subr.mxu0 0.0
        %234 = vmatpush1.msra.mxu0 0.0
        %235 = vmatprep.subr.mxu0 0.0
        %236 = vmatpush1.msra.mxu0 0.0
        %237 = vmatprep.subr.mxu0 0.0
        %238 = vmatpush1.msra.mxu0 0.0
        %239 = vmatprep.subr.mxu0 0.0
        %240 = vmatpush1.msra.mxu0 0.0
        %241 = vmatprep.subr.mxu0 0.0
        %242 = vmatpush1.msra.mxu0 0.0
        %243 = vmatprep.subr.mxu0 0.0
        %244 = vmatpush1.msra.mxu0 0.0
        %245 = vmatprep.subr.mxu0 0.0
        %246 = vmatpush1.msra.mxu0 0.0
        %247 = vmatprep.mubr.f32.mxu0 0.0
        %248 = vmatmul.mubr.f32.gmra.mrb[0].mxu0 %v181
        %v249 = vpop.f32.mrb[0].mxu0
        %v250 = vadd.f32 0.0, %v249
        %v251 = vpop.f32.mrb[0].mxu0
        %252 = vdwg.mxu0
        %253 = vst.msk [vmem:[%s173] sm:$0xff] %vm179, %v250
        %s254 = sand.u32 %s75, 1
        %s255 = scalar_lea.sflag [#allocation4], %s254
        %s256 = sand.u32 %s75, 1
        %s257 = smul.addr %s256, 8
        %s258 = scalar_lea.vmem [#allocation7], %s257
        // Predicated region
        $region37: #{project_key.1} parent=27 // pred_check
          %p259 = pneg %p85
        $region38: #{project_key.1} parent=27 // pred_check_branch
          %261 = sbr.rel (%p259) target = $region40
        $region39: #{project_key.1} parent=27 // pred_region
          %s263 = ssub.s32 128, 128
          %264 = vsyncadd %s255, %s263
          %s265 = smul.addr %s20, 128
          %s266 = scalar_lea.hbm %s2, %s265
          %s268 = sshll.u32 %s258, 4
          %s269 = int_to_ptr.vmem [resolvable:$true] %s268
          %271 = dma.vmem_to_hbm [thread:$0]  %s269, 128, %s266, %s255
        $region40: #{project_key.1} parent=27 // pred_fallthru
          _
      $region28: #{project_key.1} parent=5 // pred_fallthru
        _
      %p272 = scmp.le.s32.totalorder 2, %s15
      // Predicated region
      $region41: #{project_key.1} parent=5 // pred_check
        %p273 = pneg %p272
      $region42: #{project_key.1} parent=5 // pred_check_branch
        %275 = sbr.rel (%p273) target = $region44
      $region43: #{project_key.1} parent=5 // pred_region
        %s276 = ssub.s32 %s15, 2
        // Predicated region
        $region45: #{project_key.1} parent=43 // pred_check
          %p277 = pneg %p91
        $region46: #{project_key.1} parent=43 // pred_check_branch
          %279 = sbr.rel (%p277) target = $region48
        $region47: #{project_key.1} parent=43 // pred_region
          %s280 = sand.u32 %s76, 1
          %s281 = scalar_lea.sflag [#allocation4], %s280
          %s282 = sand.u32 %s76, 1
          %s283 = smul.addr %s282, 8
          %s284 = scalar_lea.vmem [#allocation7], %s283
          %285 = dma.done %s281, 128
        $region48: #{project_key.1} parent=43 // pred_fallthru
          _
      $region44: #{project_key.1} parent=5 // pred_fallthru
        _
    $region6: #{project_key.1} parent=1 // loop_footer
      %s19 = sadd.s32 1, %s15
    $region7: #{project_key.1} parent=1 // loop_footer_branch
      %14 = sbr.rel target = $region3
    $region8: #{project_key.1} parent=1 // loop_exit
      _
    %286 = vsyncpa [#allocation3], 1
    %s287 = scalar_lea.sflag [#allocation3], 1
    %288 = vsyncpa %s287, 1
    %289 = vsyncpa [#allocation6], 1
    %290 = vsyncpa [#allocation4], 1
    %s291 = scalar_lea.sflag [#allocation4], 1
    %292 = vsyncpa %s291, 1

</llo_original>
